<compile_context>
chip_gen: v7x
topology: tpu7x:2x2x1
jax: 0.10.0
libtpu: 0.0.40
codegen_flags: <defaults>
</compile_context>

<pallas_src>
import functools

import jax
import jax.numpy as jnp
from jax.experimental import pallas as pl
from jax.experimental.pallas import tpu as pltpu

_SMOOTH_CENTER = 5.0
_SMOOTH_SCALE = 13.0
_F32 = 4


# ----------------------------------------------------------------------------
# Planning helpers
# ----------------------------------------------------------------------------
def _vmem_capacity_bytes():
    try:
        cap = int(getattr(pltpu.get_tpu_info(), "vmem_capacity_bytes", 0) or 0)
        if cap > 0:
            return cap
    except Exception:
        pass
    return 64 << 20  # conservative default (v7x per-TensorCore VMEM)


def _sublane_multiple(dtype):
    # Second-minor tile: 8 for 4-byte, 16 for 2-byte, 32 for 1-byte dtypes.
    return max(8, 32 // jnp.dtype(dtype).itemsize)


def _fused_vmem_need(n_elems, itemsize):
    # 2x double-buffered input + 2x output blocks + ~4 block-sized f32 temps.
    return 4 * n_elems * itemsize + 4 * n_elems * _F32


def _strip_vmem_need(strip_h, w, itemsize):
    halo = (strip_h + 2) * w
    return halo * itemsize + 2 * strip_h * w * itemsize + 4 * halo * _F32


def _plan(nc, h, w, dtype, force_strip_h=None):
    """Pick a tiling: ('fused', channels_per_block) or ('strip', strip_h)."""
    cap = _vmem_capacity_bytes()
    itemsize = jnp.dtype(dtype).itemsize
    sub = _sublane_multiple(dtype)
    budget = int(cap * 0.8) - (2 << 20)
    # Generation-aware block target: ~8 MiB f32 working tile on 64 MiB-VMEM
    # chips (v7x), ~16 MiB on 128 MiB chips (v5e / v6e).
    soft_cap_f32 = (16 << 20) if cap > (96 << 20) else (8 << 20)

    if force_strip_h is not None:
        assert h % force_strip_h == 0 and force_strip_h < h
        assert force_strip_h % sub == 0
        return "strip", force_strip_h, cap

    # 1) Fused plan: each block is `bc` whole channel images, shape (bc, h, w).
    #    Prefer a grid of >= 2 (ideally even) steps for v7x megacore sharding,
    #    then the largest block that fits the soft target and the VMEM budget.
    cands = []
    for bc in range(1, nc + 1):
        if nc % bc:
            continue
        if bc * h * w * _F32 > soft_cap_f32 and bc > 1:
            continue
        if _fused_vmem_need(bc * h * w, itemsize) > budget:
            continue
        grid = nc // bc
        cands.append((grid >= 2, grid % 2 == 0, bc))
    if cands:
        cands.sort()
        return "fused", cands[-1][2], cap

    # 2) H-strip plan with a 1-row halo: a single channel doesn't fit, so tile
    #    its rows (avoids the old whole-array fallback that could OOM VMEM).
    strips = [sh for sh in range(sub, h, sub)
              if h % sh == 0 and _strip_vmem_need(sh, w, itemsize) <= budget]
    if strips:
        under = [sh for sh in strips if (sh + 2) * w * _F32 <= soft_cap_f32]
        return "strip", (max(under) if under else max(strips)), cap

    # 3) Last resort: one whole-array block (grid of 1).
    # TODO(synk): ragged H-strips would avoid this potentially VMEM-oversized
    # block when h has no sublane-aligned divisor.
    return "fused", nc, cap


# ----------------------------------------------------------------------------
# In-kernel helpers
# ----------------------------------------------------------------------------
def _upcast(v):
    if jnp.issubdtype(v.dtype, jnp.integer):
        return v.astype(jnp.int32).astype(jnp.float32)
    return v.astype(jnp.float32)


def _downcast(v, dtype):
    if jnp.issubdtype(dtype, jnp.integer):
        # PIL quantizes to uint8; values are already clamped to [0, 255].
        return jnp.floor(v + 0.5).astype(jnp.int32).astype(dtype)
    return v.astype(dtype)


def _shifted_pair(x, axis):
    """(x shifted +1, x shifted -1) along `axis` of a 2-D block, circular wrap.

    Wrapped rows/cols only ever land on 1-pixel image borders (or on halo rows
    whose outputs are discarded); those pixels are replaced with originals, so
    the wrap content is irrelevant.
    """
    n = x.shape[axis]
    if x.shape[-2] % 8 == 0 and x.shape[-1] % 128 == 0:
        # XLU rotate: off the VALU / load-store path.
        return pltpu.roll(x, 1, axis=axis), pltpu.roll(x, n - 1, axis=axis)
    # TODO(synk): relax to per-axis gating (sublane rolls without lane
    # alignment) once verified against the Mosaic rotate lowering.
    if axis == 0:
        return (jnp.concatenate([x[-1:, :], x[:-1, :]], axis=0),
                jnp.concatenate([x[1:, :], x[:1, :]], axis=0))
    return (jnp.concatenate([x[:, -1:], x[:, :-1]], axis=1),
            jnp.concatenate([x[:, 1:], x[:, :1]], axis=1))


def _sharpen_2d(x, f):
    """Separable 3x3 SMOOTH ([[1,1,1],[1,5,1],[1,1,1]]/13) + PIL blend, clamped."""
    up, down = _shifted_pair(x, 0)
    rowsum = x + up + down
    left, right = _shifted_pair(rowsum, 1)
    box = rowsum + left + right
    smooth = (box + (_SMOOTH_CENTER - 1.0) * x) * (1.0 / _SMOOTH_SCALE)
    # Image.blend(degenerate, image, f) = degenerate + f * (image - degenerate)
    return jnp.clip(smooth + f * (x - smooth), 0.0, 255.0)


def _border_mask(h, w):
    row = jax.lax.broadcasted_iota(jnp.int32, (h, w), 0)
    col = jax.lax.broadcasted_iota(jnp.int32, (h, w), 1)
    return (row == 0) | (row == h - 1) | (col == 0) | (col == w - 1)


# ----------------------------------------------------------------------------
# Kernels
# ----------------------------------------------------------------------------
def _fused_kernel(factor_ref, x_ref, o_ref):
    """Block = (bc, h, w): `bc` whole channel images."""
    bc, h, w = x_ref.shape
    f = factor_ref[0]
    border = _border_mask(h, w)          # hoisted: loop-invariant

    def body(k, carry):
        x = _upcast(x_ref[k])
        blend = _sharpen_2d(x, f)
        # PIL leaves the 1-pixel border equal to the original: in-register
        # select + one full-width store (no masked partial stores).
        o_ref[k] = _downcast(jnp.where(border, x, blend), o_ref.dtype)
        return carry

    jax.lax.fori_loop(0, bc, body, 0)


def _strip_kernel(h, strip_h, factor_ref, x_hbm, o_ref, buf, sem):
    """One H-strip of one channel; input DMA'd manually with a 1-row halo."""
    c = pl.program_id(0)
    s = pl.program_id(1)
    rows = strip_h + 2
    w = o_ref.shape[-1]

    # Strip covers image rows [r0, r0 + strip_h); load it plus a 1-row halo on
    # each side, clamped into the image so the copy size stays static.
    r0 = s * strip_h
    src_start = jnp.clip(r0 - 1, 0, h - rows)
    cp = pltpu.make_async_copy(x_hbm.at[c, pl.ds(src_start, rows), :], buf,
                               sem.at[0])
    cp.start()
    # TODO(synk): double-buffer this input DMA across strips; output writeback
    # is already pipelined by Pallas.
    cp.wait()

    x = _upcast(buf[...])
    blend = _sharpen_2d(x, factor_ref[0])
    row = jax.lax.broadcasted_iota(jnp.int32, (rows, w), 0) + src_start
    col = jax.lax.broadcasted_iota(jnp.int32, (rows, w), 1)
    border = (row == 0) | (row == h - 1) | (col == 0) | (col == w - 1)
    out_full = jnp.where(border, x, blend)

    # Offset of the strip inside the loaded buffer: 0 (first strip of the
    # channel), 1 (interior strip), or 2 (last strip).
    local = r0 - src_start
    for off in (0, 1, 2):
        @pl.when(local == off)
        def _(off=off):
            o_ref[...] = _downcast(out_full[off:off + strip_h, :], o_ref.dtype)


# ----------------------------------------------------------------------------
# Wrappers
# ----------------------------------------------------------------------------
def sharpness_enhance(x, factor, *, force_strip_h=None):
    """x: (N, C, H, W), float32 in [0, 255] or uint8; factor: scalar."""
    n, c, h, w = x.shape
    nc = n * c
    dtype = x.dtype
    itemsize = jnp.dtype(dtype).itemsize
    mode, param, cap = _plan(nc, h, w, dtype, force_strip_h)
    factor_arr = jnp.asarray(factor, jnp.float32).reshape(1)

    def vmem_limit(need):
        return int(min(max(need + (4 << 20), 32 << 20), int(cap * 0.9)))

    if mode == "fused":
        bc = param
        need = _fused_vmem_need(bc * h * w, itemsize)
        out = pl.pallas_call(
            _fused_kernel,
            out_shape=jax.ShapeDtypeStruct((nc, h, w), dtype),
            grid=(nc // bc,),
            in_specs=[
                pl.BlockSpec(memory_space=pltpu.MemorySpace.SMEM),   # factor
                pl.BlockSpec((bc, h, w), lambda i: (i, 0, 0)),       # image
            ],
            out_specs=pl.BlockSpec((bc, h, w), lambda i: (i, 0, 0)),
            compiler_params=pltpu.CompilerParams(
                dimension_semantics=("parallel",),
                vmem_limit_bytes=vmem_limit(need),
            ),
        )(factor_arr, x.reshape(nc, h, w))
        return out.reshape(n, c, h, w)

    strip_h = param
    need = _strip_vmem_need(strip_h, w, itemsize)
    out = pl.pallas_call(
        functools.partial(_strip_kernel, h, strip_h),
        out_shape=jax.ShapeDtypeStruct((nc, h, w), dtype),
        grid=(nc, h // strip_h),
        in_specs=[
            pl.BlockSpec(memory_space=pltpu.MemorySpace.SMEM),       # factor
            pl.BlockSpec(memory_space=pl.ANY),                       # image HBM
        ],
        out_specs=pl.BlockSpec((None, strip_h, w), lambda ci, si: (ci, si, 0)),
        scratch_shapes=[
            pltpu.VMEM((strip_h + 2, w), dtype),                     # halo buf
            pltpu.SemaphoreType.DMA((1,)),
        ],
        compiler_params=pltpu.CompilerParams(
            dimension_semantics=("parallel", "parallel"),
            vmem_limit_bytes=vmem_limit(need),
        ),
    )(factor_arr, x.reshape(nc, h, w))
    return out.reshape(n, c, h, w)


def random_sharpness_change(x, key, sharpness_factor_range=(0.5, 2.0), p=0.5):
    """Host-side glue reproducing the random decision of the nn.Module."""
    k_apply, k_factor = jax.random.split(key)
    apply = jax.random.uniform(k_apply) < p
    sf = jax.random.uniform(
        k_factor,
        minval=sharpness_factor_range[0],
        maxval=sharpness_factor_range[1],
    )
    # Short-circuit: when not applying, skip the kernel (and HBM traffic).
    out = jax.lax.cond(apply,
                       lambda img: sharpness_enhance(img, sf),
                       lambda img: img,
                       x)
    factor = jnp.where(apply, sf, jnp.float32(1.0))
    return out, factor


# ----------------------------------------------------------------------------
# Pure-JAX reference and tests
# ----------------------------------------------------------------------------
def _reference(x, factor):
    """Pure-JAX reference of PIL Sharpness.enhance for validation."""
    xf = x.astype(jnp.float32)
    _, _, h, w = x.shape
    acc = _SMOOTH_CENTER * xf
    for dr in (-1, 0, 1):
        for dc in (-1, 0, 1):
            if dr == 0 and dc == 0:
                continue
            acc = acc + jnp.roll(jnp.roll(xf, dr, axis=2), dc, axis=3)
    smooth = acc / _SMOOTH_SCALE
    row = jnp.arange(h)[:, None]
    col = jnp.arange(w)[None, :]
    border = (row == 0) | (row == h - 1) | (col == 0) | (col == w - 1)
    blend = jnp.clip(smooth + factor * (xf - smooth), 0.0, 255.0)
    out = jnp.where(border[None, None], xf, blend)
    if jnp.issubdtype(x.dtype, jnp.integer):
        return jnp.floor(out + 0.5).astype(jnp.int32).astype(x.dtype)
    return out.astype(x.dtype)


if __name__ == "__main__":
    key = jax.random.PRNGKey(0)
    k_img, k_img2, k_strip, k_rand = jax.random.split(key, 4)

    # Case 1: small f32 image, fused-NC path (concat-shift fallback, W=16).
    N, C, H, W = 2, 4, 16, 16
    x = jax.random.uniform(k_img, (N, C, H, W), jnp.float32,
                           minval=0.0, maxval=255.0)
    for f in (0.3, 1.0, 1.7):
        out = jax.block_until_ready(sharpness_enhance(x, f))
        ref = _reference(x, f)
        assert out.shape == x.shape and out.dtype == x.dtype
        assert jnp.allclose(out, ref, atol=1e-3, rtol=1e-5), \
            f"f32 fused mismatch, factor={f}"

    # Case 2: lane-dense image (pltpu.roll / XLU path).
    x2 = jax.random.uniform(k_img2, (1, 2, 8, 128), jnp.float32,
                            minval=0.0, maxval=255.0)
    out2 = jax.block_until_ready(sharpness_enhance(x2, 1.6))
    assert jnp.allclose(out2, _reference(x2, 1.6), atol=1e-3, rtol=1e-5), \
        "lane-dense mismatch"

    # Case 3: uint8 I/O (4x less HBM traffic; PIL-like uint8 output).
    x_u8 = (x + 0.5).astype(jnp.uint8)
    out_u8 = jax.block_until_ready(sharpness_enhance(x_u8, 1.7))
    ref_u8 = _reference(x_u8, 1.7)
    assert out_u8.dtype == jnp.uint8 and out_u8.shape == x_u8.shape
    diff = jnp.abs(out_u8.astype(jnp.int32) - ref_u8.astype(jnp.int32))
    assert int(diff.max()) <= 1, "uint8 mismatch"

    # Case 4: forced H-strip (halo) path, as used for large frames.
    x3 = jax.random.uniform(k_strip, (1, 2, 32, 128), jnp.float32,
                            minval=0.0, maxval=255.0)
    out3 = jax.block_until_ready(sharpness_enhance(x3, 0.7, force_strip_h=8))
    assert jnp.allclose(out3, _reference(x3, 0.7), atol=1e-3, rtol=1e-5), \
        "strip path mismatch"

    # Case 5: random glue path (the module's coin flip + factor sampling).
    out_r, factor = random_sharpness_change(x, k_rand)
    out_r = jax.block_until_ready(out_r)
    ref_r = _reference(x, factor)
    assert jnp.allclose(out_r, ref_r, atol=1e-3, rtol=1e-5), \
        "random path mismatch"

    print("KERNEL_OK")
</pallas_src>

<mosaic_0001>
module attributes {stable_mosaic.version = 11 : i64} {
  func.func @_fused_kernel(%arg0: i32, %arg1: memref<1xf32, #tpu.memory_space<smem>>, %arg2: memref<4x16x16xf32, #tpu.memory_space<vmem>>, %arg3: memref<4x16x16xf32, #tpu.memory_space<vmem>>) attributes {dimension_semantics = [#tpu.dimension_semantics<parallel>], iteration_bounds = array<i64: 2>, scalar_prefetch = 0 : i64, scratch_operands = 0 : i64, tpu.core_type = #tpu.core_type<tc>, window_params = [{transform_indices = @transform_0, window_bounds = array<i64: 1>}, {transform_indices = @transform_1, window_bounds = array<i64: 4, 16, 16>}, {transform_indices = @transform_2, window_bounds = array<i64: 4, 16, 16>}]} {
    %c0 = arith.constant 0 : index
    %0 = memref.load %arg1[%c0] : memref<1xf32, #tpu.memory_space<smem>>
    %1 = tpu.iota {dimensions = array<i32: 0>} : vector<16x16xi32>
    %2 = tpu.iota {dimensions = array<i32: 1>} : vector<16x16xi32>
    %c0_i32 = arith.constant 0 : i32
    %3 = vector.broadcast %c0_i32 : i32 to vector<16x16xi32>
    %4 = arith.cmpi eq, %1, %3 : vector<16x16xi32>
    %c15_i32 = arith.constant 15 : i32
    %5 = vector.broadcast %c15_i32 : i32 to vector<16x16xi32>
    %6 = arith.cmpi eq, %1, %5 : vector<16x16xi32>
    %7 = arith.ori %4, %6 : vector<16x16xi1>
    %c0_i32_0 = arith.constant 0 : i32
    %8 = vector.broadcast %c0_i32_0 : i32 to vector<16x16xi32>
    %9 = arith.cmpi eq, %2, %8 : vector<16x16xi32>
    %10 = arith.ori %7, %9 : vector<16x16xi1>
    %c15_i32_1 = arith.constant 15 : i32
    %11 = vector.broadcast %c15_i32_1 : i32 to vector<16x16xi32>
    %12 = arith.cmpi eq, %2, %11 : vector<16x16xi32>
    %13 = arith.ori %10, %12 : vector<16x16xi1>
    %c0_i32_2 = arith.constant 0 : i32
    %c4_i32 = arith.constant 4 : i32
    %14 = arith.addi %c0_i32_2, %c4_i32 : i32
    %c1_i32 = arith.constant 1 : i32
    scf.for %arg4 = %c0_i32_2 to %14 step %c1_i32  : i32 {
      %15 = arith.index_cast %arg4 : i32 to index
      %c0_4 = arith.constant 0 : index
      %c0_5 = arith.constant 0 : index
      %16 = vector.load %arg2[%15, %c0_4, %c0_5] : memref<4x16x16xf32, #tpu.memory_space<vmem>>, vector<1x16x16xf32>
      %17 = vector.shape_cast %16 : vector<1x16x16xf32> to vector<16x16xf32>
      %18 = vector.extract_strided_slice %17 {offsets = [15, 0], sizes = [1, 16], strides = [1, 1]} : vector<16x16xf32> to vector<1x16xf32>
      %19 = vector.extract_strided_slice %17 {offsets = [0, 0], sizes = [15, 16], strides = [1, 1]} : vector<16x16xf32> to vector<15x16xf32>
      %20 = tpu.concatenate %18, %19 in 0 : vector<1x16xf32>, vector<15x16xf32> -> vector<16x16xf32>
      %21 = vector.extract_strided_slice %17 {offsets = [1, 0], sizes = [15, 16], strides = [1, 1]} : vector<16x16xf32> to vector<15x16xf32>
      %22 = vector.extract_strided_slice %17 {offsets = [0, 0], sizes = [1, 16], strides = [1, 1]} : vector<16x16xf32> to vector<1x16xf32>
      %23 = tpu.concatenate %21, %22 in 0 : vector<15x16xf32>, vector<1x16xf32> -> vector<16x16xf32>
      %24 = arith.addf %17, %20 : vector<16x16xf32>
      %25 = arith.addf %24, %23 : vector<16x16xf32>
      %26 = vector.extract_strided_slice %25 {offsets = [0, 15], sizes = [16, 1], strides = [1, 1]} : vector<16x16xf32> to vector<16x1xf32>
      %27 = vector.extract_strided_slice %25 {offsets = [0, 0], sizes = [16, 15], strides = [1, 1]} : vector<16x16xf32> to vector<16x15xf32>
      %28 = tpu.concatenate %26, %27 in 1 : vector<16x1xf32>, vector<16x15xf32> -> vector<16x16xf32>
      %29 = vector.extract_strided_slice %25 {offsets = [0, 1], sizes = [16, 15], strides = [1, 1]} : vector<16x16xf32> to vector<16x15xf32>
      %30 = vector.extract_strided_slice %25 {offsets = [0, 0], sizes = [16, 1], strides = [1, 1]} : vector<16x16xf32> to vector<16x1xf32>
      %31 = tpu.concatenate %29, %30 in 1 : vector<16x15xf32>, vector<16x1xf32> -> vector<16x16xf32>
      %32 = arith.addf %25, %28 : vector<16x16xf32>
      %33 = arith.addf %32, %31 : vector<16x16xf32>
      %cst = arith.constant 4.000000e+00 : f32
      %34 = vector.broadcast %cst : f32 to vector<16x16xf32>
      %35 = arith.mulf %34, %17 : vector<16x16xf32>
      %36 = arith.addf %33, %35 : vector<16x16xf32>
      %cst_6 = arith.constant 0.0769230798 : f32
      %37 = vector.broadcast %cst_6 : f32 to vector<16x16xf32>
      %38 = arith.mulf %36, %37 : vector<16x16xf32>
      %39 = arith.subf %17, %38 : vector<16x16xf32>
      %40 = vector.broadcast %0 : f32 to vector<16x16xf32>
      %41 = arith.mulf %40, %39 : vector<16x16xf32>
      %42 = arith.addf %38, %41 : vector<16x16xf32>
      %cst_7 = arith.constant 0.000000e+00 : f32
      %cst_8 = arith.constant 2.550000e+02 : f32
      %43 = vector.broadcast %cst_7 : f32 to vector<16x16xf32>
      %44 = arith.maximumf %43, %42 : vector<16x16xf32>
      %45 = vector.broadcast %cst_8 : f32 to vector<16x16xf32>
      %46 = arith.minimumf %45, %44 : vector<16x16xf32>
      %47 = arith.select %13, %17, %46 : vector<16x16xi1>, vector<16x16xf32>
      %48 = arith.index_cast %arg4 : i32 to index
      %c0_9 = arith.constant 0 : index
      %c0_10 = arith.constant 0 : index
      %49 = vector.load %arg3[%48, %c0_9, %c0_10] : memref<4x16x16xf32, #tpu.memory_space<vmem>>, vector<1x16x16xf32>
      %50 = vector.shape_cast %49 : vector<1x16x16xf32> to vector<16x16xf32>
      %51 = vector.shape_cast %47 : vector<16x16xf32> to vector<1x16x16xf32>
      tpu.vector_store %arg3[%48, %c0_9, %c0_10], %51 {strides = array<i32>} : memref<4x16x16xf32, #tpu.memory_space<vmem>>, vector<1x16x16xf32>,
    }
    %c4_i32_3 = arith.constant 4 : i32
    return
  }
  func.func @transform_0(%arg0: i32) -> i32 {
    %c0_i32 = arith.constant 0 : i32
    %c0_i32_0 = arith.constant 0 : i32
    return %c0_i32 : i32
  }
  func.func @transform_1(%arg0: i32) -> (i32, i32, i32) {
    %c0_i32 = arith.constant 0 : i32
    %c0_i32_0 = arith.constant 0 : i32
    %c0_i32_1 = arith.constant 0 : i32
    return %arg0, %c0_i32, %c0_i32_0 : i32, i32, i32
  }
  func.func @transform_2(%arg0: i32) -> (i32, i32, i32) {
    %c0_i32 = arith.constant 0 : i32
    %c0_i32_0 = arith.constant 0 : i32
    %c0_i32_1 = arith.constant 0 : i32
    return %arg0, %c0_i32, %c0_i32_0 : i32, i32, i32
  }
}

</mosaic_0001>

<llo_original>
// kernel: tpu_custom_call.1
$region0: #{tpu_custom_call.1}
  #allocation0 [shape = 'u32[]', space=smem, size = 0x4, offset = 0x4, fixed_abs, tag = 'smem constant byte address 0x4 - core index']
  #allocation1 [shape = 'u32[144,128]{1,0:T(1,128)}', space=vmem, size = 0x12000, scoped, tag = 'internal scratch']
  #allocation2 [shape = 'f32[1]{0:T(128)S(6)}', space=smem, size = 0x200, scoped, tag = 'scoped memory for tpu_custom_call.1']
  %s0 = inlined_call_operand.<no memory space> [shape: f32[1], index: 0, kind: input, shape index: {}]
  %s1 = inlined_call_operand.hbm [shape: f32[8,16,16], index: 1, kind: input, shape index: {}]
  %s2 = inlined_call_operand.hbm [shape: f32[8,16,16], index: 2, kind: output, shape index: {}]
  %s3 = sld [smem:[#allocation0]]
  $region52: #{tpu_custom_call.1} parent=0
    _
  %s5 = ssub.s32 1, %s3
  %s6 = scalar_select 0, %s5, %s3
  %7 = sst [smem:[#allocation2]] %s0
  $region1: #{tpu_custom_call.1} parent=0
    #allocation3 [shape = 'u8[65536]{0}', space=vmem, size = 0x10000, scoped, tag = 'input window, operand 1']
    #allocation4 [shape = 's32[2]{0}', space=sflag, size = 0x8, scoped, tag = 'scoped memory for tpu_custom_call.1']
    #allocation5 [shape = 's32[2]{0}', space=sflag, size = 0x8, scoped, tag = 'scoped memory for tpu_custom_call.1']
    #allocation6 [shape = 'u8[65536]{0}', space=vmem, size = 0x10000, scoped, tag = 'output window, operand 0']
    %8 = vsyncpa [#allocation4], 0
    %s9 = scalar_lea.sflag [#allocation4], 1
    %10 = vsyncpa %s9, 0
    %11 = vsyncpa [#allocation5], 0
    %s12 = scalar_lea.sflag [#allocation5], 1
    %13 = vsyncpa %s12, 0
    loop: start=0, step=1, limit=4
    $region2: #{tpu_custom_call.1} parent=1 // loop_pre_header
      _
    $region3: #{tpu_custom_call.1} parent=1 // loop_header
      %s15 = sphi 0, %s19
      %p16 = scmp.ge.s32.totalorder %s15, 4
      %s23 = sphi 0, %s23
      %s25 = sphi 0, %s23
      %s26 = sphi 0, %s25
      %s40 = sphi 0, %s26
      %s46 = sphi 0, %s48
      %s49 = sphi 0, %s46
      %s50 = sphi 0, %s49
      %s66 = sphi 0, %s50
      %s72 = sphi 0, %s74
      %s75 = sphi 0, %s72
      %s76 = sphi 0, %s75
      %s92 = sphi 0, %s76
    $region4: #{tpu_custom_call.1} parent=1 // loop_header_branch
      %18 = sbr.rel (%p16) target = $region8
    $region5: #{tpu_custom_call.1} parent=1 // loop_body
      %s20 = ssub.s32 %s15, 1
      %s21 = ssub.s32 %s15, 2
      %s22 = sadd.s32 %s15, 1
      %s24 = sadd.s32 %s23, 1
      %p27 = scmp.eq.s32.totalorder %s15, 1
      %p28 = scmp.ne.s32.totalorder %s23, %s25
      %p29 = scmp.eq.s32.totalorder %s15, 0
      %p30 = por %p28, %p29
      %p31 = scmp.ne.s32.totalorder %s23, %s25
      %p32 = scmp.eq.s32.totalorder %s20, 1
      %p33 = por %p31, %p32
      %p34 = scmp.ne.s32.totalorder %s25, %s26
      %p35 = scmp.eq.s32.totalorder %s20, 0
      %p36 = por %p34, %p35
      %p37 = scmp.ne.s32.totalorder %s25, %s26
      %p38 = scmp.eq.s32.totalorder %s21, 1
      %p39 = por %p37, %p38
      %p41 = scmp.ne.s32.totalorder %s26, %s40
      %p42 = scmp.eq.s32.totalorder %s21, 0
      %p43 = por %p41, %p42
      %s44 = ssub.s32 %s15, %s22
      %p45 = scmp.eq.s32.totalorder %s44, 0
      %s47 = sadd.s32 %s46, 1
      %s48 = scalar_select %p45, %s46, %s47
      %p51 = pneg %p45
      %p52 = scmp.eq.s32.totalorder %s15, 1
      %p53 = por %p51, %p52
      %p54 = scmp.ne.s32.totalorder %s46, %s49
      %p55 = scmp.eq.s32.totalorder %s15, 0
      %p56 = por %p54, %p55
      %p57 = scmp.ne.s32.totalorder %s46, %s49
      %p58 = scmp.eq.s32.totalorder %s20, 1
      %p59 = por %p57, %p58
      %p60 = scmp.ne.s32.totalorder %s49, %s50
      %p61 = scmp.eq.s32.totalorder %s20, 0
      %p62 = por %p60, %p61
      %p63 = scmp.ne.s32.totalorder %s49, %s50
      %p64 = scmp.eq.s32.totalorder %s21, 1
      %p65 = por %p63, %p64
      %p67 = scmp.ne.s32.totalorder %s50, %s66
      %p68 = scmp.eq.s32.totalorder %s21, 0
      %p69 = por %p67, %p68
      %s70 = ssub.s32 %s15, %s22
      %p71 = scmp.eq.s32.totalorder %s70, 0
      %s73 = sadd.s32 %s72, 1
      %s74 = scalar_select %p71, %s72, %s73
      %p77 = pneg %p71
      %p78 = scmp.eq.s32.totalorder %s15, 1
      %p79 = por %p77, %p78
      %p80 = scmp.ne.s32.totalorder %s72, %s75
      %p81 = scmp.eq.s32.totalorder %s15, 0
      %p82 = por %p80, %p81
      %p83 = scmp.ne.s32.totalorder %s72, %s75
      %p84 = scmp.eq.s32.totalorder %s20, 1
      %p85 = por %p83, %p84
      %p86 = scmp.ne.s32.totalorder %s75, %s76
      %p87 = scmp.eq.s32.totalorder %s20, 0
      %p88 = por %p86, %p87
      %p89 = scmp.ne.s32.totalorder %s75, %s76
      %p90 = scmp.eq.s32.totalorder %s21, 1
      %p91 = por %p89, %p90
      %p93 = scmp.ne.s32.totalorder %s76, %s92
      %p94 = scmp.eq.s32.totalorder %s21, 0
      %p95 = por %p93, %p94
      %p96 = scmp.le.s32.totalorder 1, %s15
      %p97 = scmp.lt.s32.totalorder %s15, 3
      %p98 = pnand %p96, %p97
      %p99 = pneg %p98
      // Predicated region
      $region9: #{tpu_custom_call.1} parent=5 // pred_check
        _
      $region10: #{tpu_custom_call.1} parent=5 // pred_check_branch
        %101 = sbr.rel (%p98) target = $region12
      $region11: #{tpu_custom_call.1} parent=5 // pred_region
        %s102 = ssub.s32 %s15, 1
        // Predicated region
        $region13: #{tpu_custom_call.1} parent=11 // pred_check
          %p103 = pneg %p36
        $region14: #{tpu_custom_call.1} parent=11 // pred_check_branch
          %105 = sbr.rel (%p103) target = $region16
        $region15: #{tpu_custom_call.1} parent=11 // pred_region
          _
        $region16: #{tpu_custom_call.1} parent=11 // pred_fallthru
          _
      $region12: #{tpu_custom_call.1} parent=5 // pred_fallthru
        _
      %p106 = scmp.lt.s32.totalorder %s15, 2
      // Predicated region
      $region17: #{tpu_custom_call.1} parent=5 // pred_check
        %p107 = pneg %p106
      $region18: #{tpu_custom_call.1} parent=5 // pred_check_branch
        %109 = sbr.rel (%p107) target = $region20
      $region19: #{tpu_custom_call.1} parent=5 // pred_region
        // Predicated region
        $region21: #{tpu_custom_call.1} parent=19 // pred_check
          %p110 = pneg %p56
        $region22: #{tpu_custom_call.1} parent=19 // pred_check_branch
          %112 = sbr.rel (%p110) target = $region24
        $region23: #{tpu_custom_call.1} parent=19 // pred_region
          %s113 = sand.u32 %s46, 1
          %s114 = scalar_lea.sflag [#allocation4], %s113
          %s115 = sand.u32 %s46, 1
          %s116 = smul.addr %s115, 64
          %s117 = scalar_lea.vmem [#allocation3], %s116
          %s118 = smul.u32 4, %s15
          %s120 = ssub.s32 1024, 1024
          %121 = vsyncadd %s114, %s120
          %s122 = smul.addr %s118, 2
          %s123 = smul.addr %s122, 128
          %s124 = scalar_lea.hbm %s1, %s123
          %s125 = sshll.u32 %s117, 4
          %s126 = int_to_ptr.vmem [resolvable:$true] %s125
          %131 = dma.hbm_to_vmem [thread:$0]  %s124, 1024, %s126, %s114, 128, 128, 8
        $region24: #{tpu_custom_call.1} parent=19 // pred_fallthru
          _
      $region20: #{tpu_custom_call.1} parent=5 // pred_fallthru
        _
      %p132 = scmp.le.s32.totalorder 1, %s15
      %p133 = scmp.lt.s32.totalorder %s15, 3
      %p134 = pnand %p132, %p133
      %p135 = pneg %p134
      // Predicated region
      $region25: #{tpu_custom_call.1} parent=5 // pred_check
        _
      $region26: #{tpu_custom_call.1} parent=5 // pred_check_branch
        %137 = sbr.rel (%p134) target = $region28
      $region27: #{tpu_custom_call.1} parent=5 // pred_region
        %s138 = ssub.s32 %s15, 1
        %s139 = sand.u32 %s49, 1
        %s140 = scalar_lea.sflag [#allocation4], %s139
        %s141 = sand.u32 %s49, 1
        %s142 = smul.addr %s141, 64
        %s143 = scalar_lea.vmem [#allocation3], %s142
        // Predicated region
        $region29: #{tpu_custom_call.1} parent=27 // pred_check
          %p144 = pneg %p62
        $region30: #{tpu_custom_call.1} parent=27 // pred_check_branch
          %146 = sbr.rel (%p144) target = $region32
        $region31: #{tpu_custom_call.1} parent=27 // pred_region
          %147 = dma.done %s140, 1024
        $region32: #{tpu_custom_call.1} parent=27 // pred_fallthru
          _
        %p148 = pneg %p36
        %p149 = pneg %p33
        %s150 = sand.u32 %s49, 1
        %s151 = scalar_lea.sflag [#allocation4], %s150
        %s152 = sand.u32 %s49, 1
        %s153 = smul.addr %s152, 64
        %s154 = scalar_lea.vmem [#allocation3], %s153
        %p155 = pneg %p62
        %p156 = pneg %p59
        %p157 = pneg %p88
        %p158 = pneg %p85
        %s159 = sand.u32 %s75, 1
        %s160 = scalar_lea.sflag [#allocation5], %s159
        %s161 = sand.u32 %s75, 1
        %s162 = smul.addr %s161, 64
        %s163 = scalar_lea.vmem [#allocation6], %s162
        %s164 = smul.u32 4, %s20
        %s165 = smul.u32 4, %s20
        %s166 = sld [smem:[#allocation2]]
        %v167 = vlaneseq
        %v168 = vshrl.u32 %v167, 7
        %v169 = vadd.s32 %v168, 8
        %v170 = vlaneseq
        %v171 = vand.u32 %v170, 127
        %vm172 = vcmp.eq.s32.totalorder %v168, 0
        %vm173 = vcmp.eq.s32.totalorder %v169, 0
        %vm174 = vcmp.eq.s32.totalorder %v168, 15
        %vm175 = vcmp.eq.s32.totalorder %v169, 15
        %vm176 = vmor %vm172, %vm174
        %vm177 = vmor %vm173, %vm175
        %vm178 = vcmp.eq.s32.totalorder %v171, 0
        %vm179 = vmor %vm176, %vm178
        %vm180 = vmor %vm177, %vm178
        %vm181 = vcmp.eq.s32.totalorder %v171, 15
        %vm182 = vmor %vm179, %vm181
        %vm183 = vmor %vm180, %vm181
        loop: start=0, step=1, limit=4
        $region33: #{tpu_custom_call.1} parent=27 // loop_pre_header
          _
        $region34: #{tpu_custom_call.1} parent=27 // loop_header
          %s185 = sphi 0, %s189
          %p186 = scmp.ge.s32.totalorder %s185, 4
        $region35: #{tpu_custom_call.1} parent=27 // loop_header_branch
          %188 = sbr.rel (%p186) target = $region39
        $region36: #{tpu_custom_call.1} parent=27 // loop_body
          %s190 = smul.u32 %s185, 16
          %s191 = scalar_lea.vmem %s143, %s190 [#allocation3]
          %v192 = vld [vmem:[%s191] sm:$0xff]
          %v193 = vld [vmem:[%s191 + $0x8] sm:$0xff]
          %v195 = vrot.slane %v193, 7
          %vm198 = vcmask 1040384
          %v199 = vrot.slane %v192, 7
          %v200 = vsel %vm198, %v199, %v195
          %v203 = vsel %vm198, %v195, %v199
          %vm204 = vcmask 1046528
          %v205 = vrot.slane %v192, 1
          %v206 = vrot.slane %v193, 1
          %v207 = vsel %vm204, %v205, %v206
          %v211 = vsel %vm204, %v206, %v205
          %v212 = vadd.f32 %v192, %v203
          %v213 = vadd.f32 %v193, %v200
          %v214 = vadd.f32 %v212, %v207
          %v215 = vadd.f32 %v213, %v211
          %218 = vrot.lane.b32.xlu0 %v214, 113
          %v219 = vpop.permute.xlu0 %218
          %220 = vrot.lane.b32.xlu0 %v215, 113
          %v221 = vpop.permute.xlu0 %220
          %224 = vrot.lane.b32.xlu0 %v214, 1
          %v225 = vpop.permute.xlu0 %224
          %226 = vrot.lane.b32.xlu0 %v215, 1
          %v227 = vpop.permute.xlu0 %226
          %vm230 = vcmask 7168
          %v231 = vsel %vm230, %v219, %v225
          %v232 = vsel %vm230, %v221, %v227
          %233 = vrot.lane.b32.xlu0 %v214, 127
          %v234 = vpop.permute.xlu0 %233
          %235 = vrot.lane.b32.xlu0 %v215, 127
          %v236 = vpop.permute.xlu0 %235
          %239 = vrot.lane.b32.xlu0 %v214, 15
          %v240 = vpop.permute.xlu0 %239
          %241 = vrot.lane.b32.xlu0 %v215, 15
          %v242 = vpop.permute.xlu0 %241
          %vm245 = vcmask 121856
          %v246 = vsel %vm245, %v234, %v240
          %v247 = vsel %vm245, %v236, %v242
          %v248 = vadd.f32 %v214, %v231
          %v249 = vadd.f32 %v215, %v232
          %v250 = vadd.f32 %v248, %v246
          %v251 = vadd.f32 %v249, %v247
          %v252 = vmul.f32 %v192, 4.0
          %v253 = vmul.f32 %v193, 4.0
          %v254 = vadd.f32 %v250, %v252
          %v255 = vadd.f32 %v251, %v253
          %v256 = vmul.f32 %v254, 0.07692308
          %v257 = vmul.f32 %v255, 0.07692308
          %v258 = vsub.f32 %v192, %v256
          %v259 = vsub.f32 %v193, %v257
          %v260 = vstv %s166
          %v261 = vmul.f32 %v260, %v258
          %v262 = vmul.f32 %v260, %v259
          %v263 = vadd.f32 %v256, %v261
          %v264 = vadd.f32 %v257, %v262
          %v265 = vmax.f32 %v263, 0.0
          %v266 = vmax.f32 %v264, 0.0
          %v267 = vmin.f32 %v265, 255.0
          %v268 = vmin.f32 %v266, 255.0
          %v269 = vsel %vm182, %v192, %v267
          %v270 = vsel %vm183, %v193, %v268
          %s271 = scalar_lea.vmem %s163, %s190 [#allocation6]
          %vm272 = vcmask 130048
          %273 = vst.msk [vmem:[%s271] sm:$0xff] %vm272, %v269
          %274 = vst.msk [vmem:[%s271 + $0x8] sm:$0xff] %vm272, %v270
        $region37: #{tpu_custom_call.1} parent=27 // loop_footer
          %s189 = sadd.s32 1, %s185
        $region38: #{tpu_custom_call.1} parent=27 // loop_footer_branch
          %184 = sbr.rel target = $region34
        $region39: #{tpu_custom_call.1} parent=27 // loop_exit
          _
        %s275 = sand.u32 %s75, 1
        %s276 = scalar_lea.sflag [#allocation5], %s275
        %s277 = sand.u32 %s75, 1
        %s278 = smul.addr %s277, 64
        %s279 = scalar_lea.vmem [#allocation6], %s278
        // Predicated region
        $region40: #{tpu_custom_call.1} parent=27 // pred_check
          %p280 = pneg %p85
        $region41: #{tpu_custom_call.1} parent=27 // pred_check_branch
          %282 = sbr.rel (%p280) target = $region43
        $region42: #{tpu_custom_call.1} parent=27 // pred_region
          %s283 = smul.u32 4, %s20
          %s285 = ssub.s32 1024, 1024
          %286 = vsyncadd %s276, %s285
          %s287 = smul.addr %s283, 2
          %s288 = smul.addr %s287, 128
          %s289 = scalar_lea.hbm %s2, %s288
          %s290 = sshll.u32 %s279, 4
          %s291 = int_to_ptr.vmem [resolvable:$true] %s290
          %296 = dma.vmem_to_hbm [thread:$0]  %s291, 1024, %s289, %s276, 128, 128, 8
        $region43: #{tpu_custom_call.1} parent=27 // pred_fallthru
          _
      $region28: #{tpu_custom_call.1} parent=5 // pred_fallthru
        _
      %p297 = scmp.le.s32.totalorder 2, %s15
      // Predicated region
      $region44: #{tpu_custom_call.1} parent=5 // pred_check
        %p298 = pneg %p297
      $region45: #{tpu_custom_call.1} parent=5 // pred_check_branch
        %300 = sbr.rel (%p298) target = $region47
      $region46: #{tpu_custom_call.1} parent=5 // pred_region
        %s301 = ssub.s32 %s15, 2
        // Predicated region
        $region48: #{tpu_custom_call.1} parent=46 // pred_check
          %p302 = pneg %p91
        $region49: #{tpu_custom_call.1} parent=46 // pred_check_branch
          %304 = sbr.rel (%p302) target = $region51
        $region50: #{tpu_custom_call.1} parent=46 // pred_region
          %s305 = sand.u32 %s76, 1
          %s306 = scalar_lea.sflag [#allocation5], %s305
          %s307 = sand.u32 %s76, 1
          %s308 = smul.addr %s307, 64
          %s309 = scalar_lea.vmem [#allocation6], %s308
          %310 = dma.done %s306, 1024
        $region51: #{tpu_custom_call.1} parent=46 // pred_fallthru
          _
      $region47: #{tpu_custom_call.1} parent=5 // pred_fallthru
        _
    $region6: #{tpu_custom_call.1} parent=1 // loop_footer
      %s19 = sadd.s32 1, %s15
    $region7: #{tpu_custom_call.1} parent=1 // loop_footer_branch
      %14 = sbr.rel target = $region3
    $region8: #{tpu_custom_call.1} parent=1 // loop_exit
      _
    %311 = vsyncpa [#allocation4], 1
    %s312 = scalar_lea.sflag [#allocation4], 1
    %313 = vsyncpa %s312, 1
    %314 = vsyncpa [#allocation5], 1
    %s315 = scalar_lea.sflag [#allocation5], 1
    %316 = vsyncpa %s315, 1

</llo_original>
